<compile_context>
chip_gen: v7x
topology: tpu7x:2x2x1
jax: 0.10.0
libtpu: 0.0.40
codegen_flags: <defaults>
</compile_context>

<pallas_src>
import functools

import jax
import jax.numpy as jnp
from jax.experimental import pallas as pl
from jax.experimental.pallas import tpu as pltpu

EPS = 1e-5  # nn.LayerNorm default eps


def _pick_tile(n, pref):
    """Largest tile <= pref that evenly divides n."""
    if n <= pref:
        return n
    for t in range(pref, 0, -1):
        if n % t == 0:
            return t
    return n


# ---------------------------------------------------------------------------
# Kernel 1: row-tiled linear  y = x @ w + b   (fused QKV / Q / KV projections)
# ---------------------------------------------------------------------------
def _linear_kernel(x_ref, w_ref, b_ref, o_ref):
    o_ref[...] = (
        jnp.dot(x_ref[...], w_ref[...], preferred_element_type=jnp.float32)
        + b_ref[...]
    ).astype(o_ref.dtype)


def linear(x, w, b, *, tm_pref=256):
    M, K = x.shape
    N = w.shape[1]
    tm = _pick_tile(M, tm_pref)
    return pl.pallas_call(
        _linear_kernel,
        out_shape=jax.ShapeDtypeStruct((M, N), x.dtype),
        grid=(M // tm,),
        in_specs=[
            pl.BlockSpec((tm, K), lambda i: (i, 0)),
            pl.BlockSpec((K, N), lambda i: (0, 0)),   # weights resident across M tiles
            pl.BlockSpec((1, N), lambda i: (0, 0)),   # bias resident across M tiles
        ],
        out_specs=pl.BlockSpec((tm, N), lambda i: (i, 0)),
        compiler_params=pltpu.CompilerParams(dimension_semantics=("parallel",)),
    )(x, w, b.reshape(1, N))


# ---------------------------------------------------------------------------
# Kernel 2: fused multi-head attention + output projection + residual + LN
# (one grid step = one batch element, all heads; "parallel" over batch)
# ---------------------------------------------------------------------------
def _attn_out_ln_kernel(q_ref, k_ref, v_ref, m_ref, wo_ref, bo_ref,
                        r_ref, g_ref, bt_ref, o_ref, *, num_heads, head_dim):
    q = q_ref[0]          # (T, D)  (already scaled: head_dim**-0.5 folded into Wq)
    k = k_ref[0]          # (S, D)
    v = v_ref[0]          # (S, D)
    mask = m_ref[0, 0]    # (T, S)  additive mask

    ctx = []
    for h in range(num_heads):           # static unroll over heads
        lo = h * head_dim
        hi = lo + head_dim
        # contract last dims directly (no k.T materialization)
        s = jax.lax.dot_general(
            q[:, lo:hi], k[:, lo:hi],
            (((1,), (1,)), ((), ())),
            preferred_element_type=jnp.float32) + mask
        s = s - jnp.max(s, axis=-1, keepdims=True)
        p = jnp.exp(s)
        p = p * pl.reciprocal(jnp.sum(p, axis=-1, keepdims=True), approx=True)
        ctx.append(jnp.dot(p, v[:, lo:hi], preferred_element_type=jnp.float32))
    ctx = jnp.concatenate(ctx, axis=-1)                         # (T, D) lane-dense

    attn = jnp.dot(ctx, wo_ref[...], preferred_element_type=jnp.float32) + bo_ref[...]
    h_ = r_ref[0] + attn                                        # residual add
    mu = jnp.mean(h_, axis=-1, keepdims=True)
    var = jnp.mean(jnp.square(h_ - mu), axis=-1, keepdims=True)
    o_ref[0] = (
        (h_ - mu) * jax.lax.rsqrt(var + EPS) * g_ref[...] + bt_ref[...]
    ).astype(o_ref.dtype)


def fused_attn_out_ln(q, k, v, mask, wo, bo, residual, gamma, beta, num_heads):
    B, T, D = q.shape
    S = k.shape[1]
    Dh = D // num_heads
    kernel = functools.partial(_attn_out_ln_kernel, num_heads=num_heads, head_dim=Dh)
    return pl.pallas_call(
        kernel,
        out_shape=jax.ShapeDtypeStruct((B, T, D), q.dtype),
        grid=(B,),
        in_specs=[
            pl.BlockSpec((1, T, D), lambda b: (b, 0, 0)),       # q
            pl.BlockSpec((1, S, D), lambda b: (b, 0, 0)),       # k
            pl.BlockSpec((1, S, D), lambda b: (b, 0, 0)),       # v
            pl.BlockSpec((1, 1, T, S), lambda b: (b, 0, 0, 0)),  # additive mask
            pl.BlockSpec((D, D), lambda b: (0, 0)),             # Wo (resident)
            pl.BlockSpec((1, D), lambda b: (0, 0)),             # bo
            pl.BlockSpec((1, T, D), lambda b: (b, 0, 0)),       # residual
            pl.BlockSpec((1, D), lambda b: (0, 0)),             # LN gamma
            pl.BlockSpec((1, D), lambda b: (0, 0)),             # LN beta
        ],
        out_specs=pl.BlockSpec((1, T, D), lambda b: (b, 0, 0)),
        compiler_params=pltpu.CompilerParams(dimension_semantics=("parallel",)),
    )(q, k, v, mask, wo, bo.reshape(1, D), residual,
      gamma.reshape(1, D), beta.reshape(1, D))


# ---------------------------------------------------------------------------
# Kernel 3: fused FFN (fc1 -> gelu -> fc2, F-tiled reduction with accumulator)
#           + rezero residual + final LayerNorm
# ---------------------------------------------------------------------------
def _ffn_ln_kernel(rz_ref, x_ref, w1_ref, b1_ref, w2_ref, b2_ref,
                   r_ref, g_ref, bt_ref, o_ref, acc_ref):
    f = pl.program_id(1)

    @pl.when(f == 0)
    def _():
        acc_ref[...] = jnp.zeros_like(acc_ref)

    h = (jnp.dot(x_ref[...], w1_ref[...], preferred_element_type=jnp.float32)
         + b1_ref[...])
    h = jax.nn.gelu(h, approximate=False)          # ACT2FN["gelu"] = exact erf gelu
    acc_ref[...] += jnp.dot(h, w2_ref[...], preferred_element_type=jnp.float32)

    @pl.when(f == pl.num_programs(1) - 1)
    def _():
        ff = acc_ref[...] + b2_ref[...]
        h_ = r_ref[...] + rz_ref[0] * ff           # rezero residual
        mu = jnp.mean(h_, axis=-1, keepdims=True)
        var = jnp.mean(jnp.square(h_ - mu), axis=-1, keepdims=True)
        o_ref[...] = (
            (h_ - mu) * jax.lax.rsqrt(var + EPS) * g_ref[...] + bt_ref[...]
        ).astype(o_ref.dtype)


def fused_ffn_ln(x, w1, b1, w2, b2, residual, gamma, beta, rezero,
                 *, tm_pref=256, tf_pref=512):
    M, D = x.shape
    F = w1.shape[1]
    tm = _pick_tile(M, tm_pref)
    tf = _pick_tile(F, tf_pref)    # F-tiling keeps weight tiles within VMEM (v7x: 64 MiB)
    return pl.pallas_call(
        _ffn_ln_kernel,
        out_shape=jax.ShapeDtypeStruct((M, D), x.dtype),
        grid=(M // tm, F // tf),
        in_specs=[
            pl.BlockSpec(memory_space=pltpu.MemorySpace.SMEM),    # rezero scalar
            pl.BlockSpec((tm, D), lambda i, f: (i, 0)),           # x (resident over f)
            pl.BlockSpec((D, tf), lambda i, f: (0, f)),           # fc1 weight chunk
            pl.BlockSpec((1, tf), lambda i, f: (0, f)),           # fc1 bias chunk
            pl.BlockSpec((tf, D), lambda i, f: (f, 0)),           # fc2 weight chunk
            pl.BlockSpec((1, D), lambda i, f: (0, 0)),            # fc2 bias
            pl.BlockSpec((tm, D), lambda i, f: (i, 0)),           # residual
            pl.BlockSpec((1, D), lambda i, f: (0, 0)),            # LN gamma
            pl.BlockSpec((1, D), lambda i, f: (0, 0)),            # LN beta
        ],
        out_specs=pl.BlockSpec((tm, D), lambda i, f: (i, 0)),
        scratch_shapes=[pltpu.VMEM((tm, D), jnp.float32)],
        compiler_params=pltpu.CompilerParams(
            dimension_semantics=("parallel", "arbitrary")),
    )(rezero, x, w1, b1.reshape(1, F), w2, b2.reshape(1, D),
      residual, gamma.reshape(1, D), beta.reshape(1, D))


# ---------------------------------------------------------------------------
# Layer wrapper (glue in plain JAX: reshapes, weight fusion, mask concat)
# ---------------------------------------------------------------------------
def bart_decoder_layer(params, hidden_states, attention_mask,
                       encoder_hidden_states, encoder_attention_mask,
                       graph_hidden):
    B, T, D = hidden_states.shape
    H = params["num_heads"]
    Dh = D // H
    scaling = Dh ** -0.5

    sa = params["self_attn"]
    ca = params["cross_attn"]

    # --- fused projection weights (weight-only; q-scaling folded into Wq/bq) ---
    w_qkv = jnp.concatenate([sa["wq"] * scaling, sa["wk"], sa["wv"]], axis=1)  # (D, 3D)
    b_qkv = jnp.concatenate([sa["bq"] * scaling, sa["bk"], sa["bv"]])          # (3D,)
    wq_c = ca["wq"] * scaling
    bq_c = ca["bq"] * scaling
    w_kv_c = jnp.concatenate([ca["wk"], ca["wv"]], axis=1)                     # (D, 2D)
    b_kv_c = jnp.concatenate([ca["bk"], ca["bv"]])                             # (2D,)

    # ---- self attention (dropout is identity in eval mode) ----
    x2 = hidden_states.reshape(B * T, D)
    qkv = linear(x2, w_qkv, b_qkv)                       # one (D,3D) matmul
    q = qkv[:, :D].reshape(B, T, D)
    k = qkv[:, D:2 * D].reshape(B, T, D)
    v = qkv[:, 2 * D:].reshape(B, T, D)
    hidden_states = fused_attn_out_ln(
        q, k, v, attention_mask, sa["wo"], sa["bo"],
        hidden_states, params["self_ln_g"], params["self_ln_b"], H)
    self_kv = (k.reshape(B, T, H, Dh).transpose(0, 2, 1, 3),
               v.reshape(B, T, H, Dh).transpose(0, 2, 1, 3))

    # ---- cross attention with concatenated entity-graph hidden ----
    # (use_entity_graph=True, concat_entity_graph=True)
    enc = jnp.concatenate([encoder_hidden_states, graph_hidden[:, None, :]], axis=1)
    S = enc.shape[1]
    zeros_col = jnp.zeros(encoder_attention_mask.shape[:3] + (1,),
                          encoder_attention_mask.dtype)
    enc_mask = jnp.concatenate([encoder_attention_mask, zeros_col], axis=3)

    x2 = hidden_states.reshape(B * T, D)
    qc = linear(x2, wq_c, bq_c).reshape(B, T, D)
    kvc = linear(enc.reshape(B * S, D), w_kv_c, b_kv_c)  # one (D,2D) matmul
    kc = kvc[:, :D].reshape(B, S, D)
    vc = kvc[:, D:].reshape(B, S, D)
    hidden_states = fused_attn_out_ln(
        qc, kc, vc, enc_mask, ca["wo"], ca["bo"],
        hidden_states, params["cross_ln_g"], params["cross_ln_b"], H)
    cross_kv = (kc.reshape(B, S, H, Dh).transpose(0, 2, 1, 3),
                vc.reshape(B, S, H, Dh).transpose(0, 2, 1, 3))

    present_key_value = self_kv + cross_kv

    # ---- feed-forward + rezero residual + final LayerNorm (single kernel) ----
    out = fused_ffn_ln(
        hidden_states.reshape(B * T, D),
        params["fc1_w"], params["fc1_b"], params["fc2_w"], params["fc2_b"],
        hidden_states.reshape(B * T, D),
        params["final_ln_g"], params["final_ln_b"], params["rezero"],
    ).reshape(B, T, D)

    return out, present_key_value


# ---------------------------------------------------------------------------
# Deterministic parameter init
# ---------------------------------------------------------------------------
def init_params(key, D, H, F):
    keys = jax.random.split(key, 24)
    it = iter(keys)

    def w(shape):
        return jax.random.normal(next(it), shape, jnp.float32) * 0.02

    def attn_params():
        return {
            "wq": w((D, D)), "bq": w((D,)),
            "wk": w((D, D)), "bk": w((D,)),
            "wv": w((D, D)), "bv": w((D,)),
            "wo": w((D, D)), "bo": w((D,)),
        }

    return {
        "num_heads": H,
        "self_attn": attn_params(),
        "cross_attn": attn_params(),
        "self_ln_g": jnp.ones((D,), jnp.float32),
        "self_ln_b": jnp.zeros((D,), jnp.float32),
        "cross_ln_g": jnp.ones((D,), jnp.float32),
        "cross_ln_b": jnp.zeros((D,), jnp.float32),
        "final_ln_g": jnp.ones((D,), jnp.float32),
        "final_ln_b": jnp.zeros((D,), jnp.float32),
        "fc1_w": w((D, F)), "fc1_b": w((F,)),
        "fc2_w": w((F, D)), "fc2_b": w((D,)),
        "rezero": jnp.ones((1,), jnp.float32),   # nn.Parameter(torch.ones([1]))
        # graph_attn_rezero / cross_attn_rezero exist in __init__ but are unused
        # in this (concat_entity_graph=True) forward path.
    }


# ---------------------------------------------------------------------------
if __name__ == "__main__":
    B, T, D, H, ENC, FFN = 2, 8, 32, 4, 8, 64

    key = jax.random.PRNGKey(0)
    kp, kh, ke, kg = jax.random.split(key, 4)

    params = init_params(kp, D, H, FFN)

    hidden_states = jax.random.normal(kh, (B, T, D), jnp.float32)
    encoder_hidden_states = jax.random.normal(ke, (B, ENC, D), jnp.float32)
    graph_hidden = jax.random.normal(kg, (B, D), jnp.float32)

    # causal self-attention mask (batch, 1, tgt, tgt): 0 keep, -1e9 masked
    causal = jnp.where(
        jnp.arange(T)[None, :] <= jnp.arange(T)[:, None], 0.0, -1e9
    ).astype(jnp.float32)
    attention_mask = jnp.broadcast_to(causal, (B, 1, T, T))

    # encoder attention mask (batch, 1, tgt, enc): all attendable
    encoder_attention_mask = jnp.zeros((B, 1, T, ENC), jnp.float32)

    out, present_kv = bart_decoder_layer(
        params, hidden_states, attention_mask,
        encoder_hidden_states, encoder_attention_mask, graph_hidden)

    jax.block_until_ready(out)
    assert out.shape == (B, T, D)
    assert present_kv[0].shape == (B, H, T, D // H)
    assert present_kv[2].shape == (B, H, ENC + 1, D // H)
    print("KERNEL_OK")
</pallas_src>

<mosaic_0001>
module attributes {stable_mosaic.version = 11 : i64} {
  func.func @_linear_kernel(%arg0: i32, %arg1: memref<16x32xf32, #tpu.memory_space<vmem>>, %arg2: memref<32x96xf32, #tpu.memory_space<vmem>>, %arg3: memref<1x96xf32, #tpu.memory_space<vmem>>, %arg4: memref<16x96xf32, #tpu.memory_space<vmem>>) attributes {dimension_semantics = [#tpu.dimension_semantics<parallel>], iteration_bounds = array<i64: 1>, scalar_prefetch = 0 : i64, scratch_operands = 0 : i64, tpu.core_type = #tpu.core_type<tc>, window_params = [{transform_indices = @transform_0, window_bounds = array<i64: 16, 32>}, {pipeline_mode = #tpu.pipeline_mode<synchronous>, transform_indices = @transform_1, window_bounds = array<i64: 32, 96>}, {pipeline_mode = #tpu.pipeline_mode<synchronous>, transform_indices = @transform_2, window_bounds = array<i64: 1, 96>}, {transform_indices = @transform_3, window_bounds = array<i64: 16, 96>}]} {
    %c0 = arith.constant 0 : index
    %c0_0 = arith.constant 0 : index
    %0 = vector.load %arg1[%c0, %c0_0] : memref<16x32xf32, #tpu.memory_space<vmem>>, vector<16x32xf32>
    %c0_1 = arith.constant 0 : index
    %c0_2 = arith.constant 0 : index
    %1 = vector.load %arg2[%c0_1, %c0_2] : memref<32x96xf32, #tpu.memory_space<vmem>>, vector<32x96xf32>
    %cst = arith.constant dense<0.000000e+00> : vector<16x96xf32>
    %2 = tpu.matmul %0, %1, %cst {dimension_numbers = #tpu.dot_dimension_numbers<[1], [0], [0], [1], [0, 0, 1, 1], [], []>} : vector<16x32xf32>, vector<32x96xf32>, vector<16x96xf32> -> vector<16x96xf32>
    %c0_3 = arith.constant 0 : index
    %c0_4 = arith.constant 0 : index
    %3 = vector.load %arg3[%c0_3, %c0_4] : memref<1x96xf32, #tpu.memory_space<vmem>>, vector<1x96xf32>
    %4 = vector.broadcast %3 : vector<1x96xf32> to vector<16x96xf32>
    %5 = arith.addf %2, %4 : vector<16x96xf32>
    %c0_5 = arith.constant 0 : index
    %c0_6 = arith.constant 0 : index
    %6 = vector.load %arg4[%c0_5, %c0_6] : memref<16x96xf32, #tpu.memory_space<vmem>>, vector<16x96xf32>
    tpu.vector_store %arg4[%c0_5, %c0_6], %5 {strides = array<i32>} : memref<16x96xf32, #tpu.memory_space<vmem>>, vector<16x96xf32>,
    return
  }
  func.func @transform_0(%arg0: i32) -> (i32, i32) {
    %c0_i32 = arith.constant 0 : i32
    %c0_i32_0 = arith.constant 0 : i32
    return %arg0, %c0_i32 : i32, i32
  }
  func.func @transform_1(%arg0: i32) -> (i32, i32) {
    %c0_i32 = arith.constant 0 : i32
    %c0_i32_0 = arith.constant 0 : i32
    %c0_i32_1 = arith.constant 0 : i32
    return %c0_i32, %c0_i32_0 : i32, i32
  }
  func.func @transform_2(%arg0: i32) -> (i32, i32) {
    %c0_i32 = arith.constant 0 : i32
    %c0_i32_0 = arith.constant 0 : i32
    %c0_i32_1 = arith.constant 0 : i32
    return %c0_i32, %c0_i32_0 : i32, i32
  }
  func.func @transform_3(%arg0: i32) -> (i32, i32) {
    %c0_i32 = arith.constant 0 : i32
    %c0_i32_0 = arith.constant 0 : i32
    return %arg0, %c0_i32 : i32, i32
  }
}

</mosaic_0001>

<llo_original>
// kernel: tpu_custom_call.1
$region0: #{tpu_custom_call.1}
  #allocation0 [shape = 'u32[]', space=smem, size = 0x4, offset = 0x4, fixed_abs, tag = 'smem constant byte address 0x4 - core index']
  #allocation1 [shape = 'u32[144,128]{1,0:T(1,128)}', space=vmem, size = 0x12000, scoped, tag = 'internal scratch']
  %s0 = inlined_call_operand.hbm [shape: f32[16,32], index: 0, kind: input, shape index: {}]
  %s1 = inlined_call_operand.hbm [shape: f32[32,96], index: 1, kind: input, shape index: {}]
  %s2 = inlined_call_operand.vmem [shape: f32[1,96], index: 2, kind: input, shape index: {}]
  %s3 = inlined_call_operand.hbm [shape: f32[16,96], index: 3, kind: output, shape index: {}]
  %s4 = sld [smem:[#allocation0]]
  $region30: #{tpu_custom_call.1} parent=0
    _
  %s6 = ssub.s32 1, %s4
  %s7 = scalar_select 0, %s6, %s4
  $region1: #{tpu_custom_call.1} parent=0
    #allocation2 [shape = 'u8[8192]{0}', space=vmem, size = 0x2000, scoped, tag = 'input window, operand 0, single buffered']
    #allocation3 [shape = 's32[1]{0}', space=sflag, size = 0x4, scoped, tag = 'scoped memory for tpu_custom_call.1']
    #allocation4 [shape = 's32[1]{0}', space=sflag, size = 0x4, scoped, tag = 'scoped memory for tpu_custom_call.1']
    #allocation5 [shape = 'u8[16384]{0}', space=vmem, size = 0x4000, scoped, tag = 'input window, operand 1, single buffered']
    #allocation6 [shape = 's32[1]{0}', space=sflag, size = 0x4, scoped, tag = 'scoped memory for tpu_custom_call.1']
    #allocation7 [shape = 'u8[8192]{0}', space=vmem, size = 0x2000, scoped, tag = 'output window, operand 0, single buffered']
    %8 = vsyncpa [#allocation3], 0
    %9 = vsyncpa [#allocation6], 0
    %10 = vsyncpa [#allocation4], 0
    // Predicated region
    $region2: #{tpu_custom_call.1} parent=1 // pred_check
      _
    $region3: #{tpu_custom_call.1} parent=1 // pred_check_branch
      %12 = sbr.rel (0) target = $region5
    $region4: #{tpu_custom_call.1} parent=1 // pred_region
      %s14 = ssub.s32 256, 256
      %15 = vsyncadd [#allocation3], %s14
      %s16 = sshll.u32 [#allocation2], 4
      %s17 = int_to_ptr.vmem [resolvable:$true] %s16
      %22 = dma.hbm_to_vmem [thread:$0]  %s0, 256, %s17, [#allocation3], 128, 128, 8
    $region5: #{tpu_custom_call.1} parent=1 // pred_fallthru
      _
    // Predicated region
    $region6: #{tpu_custom_call.1} parent=1 // pred_check
      _
    $region7: #{tpu_custom_call.1} parent=1 // pred_check_branch
      %24 = sbr.rel (0) target = $region9
    $region8: #{tpu_custom_call.1} parent=1 // pred_region
      %s26 = ssub.s32 512, 512
      %27 = vsyncadd [#allocation6], %s26
      %s28 = sshll.u32 [#allocation5], 4
      %s29 = int_to_ptr.vmem [resolvable:$true] %s28
      %34 = dma.hbm_to_vmem [thread:$0]  %s1, 512, %s29, [#allocation6], 128, 128, 8
    $region9: #{tpu_custom_call.1} parent=1 // pred_fallthru
      _
    // Predicated region
    $region10: #{tpu_custom_call.1} parent=1 // pred_check
      _
    $region11: #{tpu_custom_call.1} parent=1 // pred_check_branch
      %36 = sbr.rel (0) target = $region13
    $region12: #{tpu_custom_call.1} parent=1 // pred_region
      _
    $region13: #{tpu_custom_call.1} parent=1 // pred_fallthru
      _
    // Predicated region
    $region14: #{tpu_custom_call.1} parent=1 // pred_check
      _
    $region15: #{tpu_custom_call.1} parent=1 // pred_check_branch
      %38 = sbr.rel (0) target = $region17
    $region16: #{tpu_custom_call.1} parent=1 // pred_region
      %39 = dma.done [#allocation3], 256
    $region17: #{tpu_custom_call.1} parent=1 // pred_fallthru
      _
    // Predicated region
    $region18: #{tpu_custom_call.1} parent=1 // pred_check
      _
    $region19: #{tpu_custom_call.1} parent=1 // pred_check_branch
      %41 = sbr.rel (0) target = $region21
    $region20: #{tpu_custom_call.1} parent=1 // pred_region
      %42 = dma.done [#allocation6], 512
    $region21: #{tpu_custom_call.1} parent=1 // pred_fallthru
      _
    %v43 = vld [vmem:[#allocation2] sm:$0xff]
    %v44 = vld [vmem:[#allocation2 + $0x8] sm:$0xff]
    %v45 = vld [vmem:[#allocation5] sm:$0xff]
    %v46 = vld [vmem:[#allocation5 + $0x8] sm:$0xff]
    %v47 = vld [vmem:[#allocation5 + $0x10] sm:$0xff]
    %v48 = vld [vmem:[#allocation5 + $0x18] sm:$0xff]
    %v49 = vld [vmem:[%s2] sm:$0x1]
    %v51 = vlaneseq
    %v52 = vshrl.u32 %v51, 7
    %v53 = vsub.s32 0, %v52
    %v54 = vrot.slane %v49, %v53
    %vm56 = vcmask 261120
    %v58 = vsel %vm56, %v43, 0
    %v61 = vsel %vm56, %v44, 0
    %63 = vmatprep.subr.mxu0 0.0
    %64 = vmatpush1.msra.mxu0 %v45
    %65 = vmatprep.subr.mxu0 0.0
    %66 = vmatpush1.msra.mxu0 %v46
    %67 = vmatprep.subr.mxu0 0.0
    %68 = vmatpush1.msra.mxu0 %v47
    %69 = vmatprep.subr.mxu0 0.0
    %70 = vmatpush1.msra.mxu0 %v48
    %71 = vmatprep.subr.mxu0 0.0
    %72 = vmatpush1.msra.mxu0 0.0
    %73 = vmatprep.subr.mxu0 0.0
    %74 = vmatpush1.msra.mxu0 0.0
    %75 = vmatprep.subr.mxu0 0.0
    %76 = vmatpush1.msra.mxu0 0.0
    %77 = vmatprep.subr.mxu0 0.0
    %78 = vmatpush1.msra.mxu0 0.0
    %79 = vmatprep.subr.mxu0 0.0
    %80 = vmatpush1.msra.mxu0 0.0
    %81 = vmatprep.subr.mxu0 0.0
    %82 = vmatpush1.msra.mxu0 0.0
    %83 = vmatprep.subr.mxu0 0.0
    %84 = vmatpush1.msra.mxu0 0.0
    %85 = vmatprep.subr.mxu0 0.0
    %86 = vmatpush1.msra.mxu0 0.0
    %87 = vmatprep.subr.mxu0 0.0
    %88 = vmatpush1.msra.mxu0 0.0
    %89 = vmatprep.subr.mxu0 0.0
    %90 = vmatpush1.msra.mxu0 0.0
    %91 = vmatprep.subr.mxu0 0.0
    %92 = vmatpush1.msra.mxu0 0.0
    %93 = vmatprep.subr.mxu0 0.0
    %94 = vmatpush1.msra.mxu0 0.0
    %95 = vmatprep.subr.mxu0 0.0
    %96 = vmatpush1.msra.mxu0 0.0
    %97 = vmatprep.subr.mxu0 0.0
    %98 = vmatpush1.msra.mxu0 0.0
    %99 = vmatprep.subr.mxu0 0.0
    %100 = vmatpush1.msra.mxu0 0.0
    %101 = vmatprep.subr.mxu0 0.0
    %102 = vmatpush1.msra.mxu0 0.0
    %103 = vmatprep.subr.mxu0 0.0
    %104 = vmatpush1.msra.mxu0 0.0
    %105 = vmatprep.subr.mxu0 0.0
    %106 = vmatpush1.msra.mxu0 0.0
    %107 = vmatprep.subr.mxu0 0.0
    %108 = vmatpush1.msra.mxu0 0.0
    %109 = vmatprep.subr.mxu0 0.0
    %110 = vmatpush1.msra.mxu0 0.0
    %111 = vmatprep.subr.mxu0 0.0
    %112 = vmatpush1.msra.mxu0 0.0
    %113 = vmatprep.subr.mxu0 0.0
    %114 = vmatpush1.msra.mxu0 0.0
    %115 = vmatprep.subr.mxu0 0.0
    %116 = vmatpush1.msra.mxu0 0.0
    %117 = vmatprep.subr.mxu0 0.0
    %118 = vmatpush1.msra.mxu0 0.0
    %119 = vmatprep.subr.mxu0 0.0
    %120 = vmatpush1.msra.mxu0 0.0
    %121 = vmatprep.subr.mxu0 0.0
    %122 = vmatpush1.msra.mxu0 0.0
    %123 = vmatprep.subr.mxu0 0.0
    %124 = vmatpush1.msra.mxu0 0.0
    %125 = vmatprep.subr.mxu0 0.0
    %126 = vmatpush1.msra.mxu0 0.0
    %127 = vmatprep.mubr.f32.mxu0 0.0
    %128 = vmatmul.mubr.f32.gmra.mrb[0].mxu0 %v58
    %v129 = vpop.f32.mrb[0].mxu0
    %v130 = vadd.f32 %v54, %v129
    %v131 = vpop.f32.mrb[0].mxu0
    %132 = vmatprep.mubr.f32.mxu0 0.0
    %133 = vmatmul.mubr.f32.gmra.mrb[0].mxu0 %v61
    %v134 = vpop.f32.mrb[0].mxu0
    %v135 = vadd.f32 %v54, %v134
    %v136 = vpop.f32.mrb[0].mxu0
    %137 = vdwg.mxu0
    %vm138 = vcmask 785408
    %139 = vst.msk [vmem:[#allocation7] sm:$0xff] %vm138, %v130
    %140 = vst.msk [vmem:[#allocation7 + $0x8] sm:$0xff] %vm138, %v135
    // Predicated region
    $region22: #{tpu_custom_call.1} parent=1 // pred_check
      _
    $region23: #{tpu_custom_call.1} parent=1 // pred_check_branch
      %142 = sbr.rel (0) target = $region25
    $region24: #{tpu_custom_call.1} parent=1 // pred_region
      %s144 = ssub.s32 256, 256
      %145 = vsyncadd [#allocation4], %s144
      %s146 = sshll.u32 [#allocation7], 4
      %s147 = int_to_ptr.vmem [resolvable:$true] %s146
      %152 = dma.vmem_to_hbm [thread:$0]  %s147, 256, %s3, [#allocation4], 128, 128, 8
    $region25: #{tpu_custom_call.1} parent=1 // pred_fallthru
      _
    // Predicated region
    $region26: #{tpu_custom_call.1} parent=1 // pred_check
      _
    $region27: #{tpu_custom_call.1} parent=1 // pred_check_branch
      %154 = sbr.rel (0) target = $region29
    $region28: #{tpu_custom_call.1} parent=1 // pred_region
      %155 = dma.done [#allocation4], 256
    $region29: #{tpu_custom_call.1} parent=1 // pred_fallthru
      _
    %156 = vsyncpa [#allocation3], 1
    %157 = vsyncpa [#allocation6], 1
    %158 = vsyncpa [#allocation4], 1

</llo_original>
